<compile_context>
chip_gen: v7x
topology: tpu7x:2x2x1
jax: 0.10.0
libtpu: 0.0.40
codegen_flags: <defaults>
</compile_context>

<pallas_src>
import jax
import jax.numpy as jnp
from jax.experimental import pallas as pl
from jax.experimental.pallas import tpu as pltpu

LANE_W = 1024  # default lane-dense last dim (multiple of 128)


def _scale_bias_relu_kernel(wb_ref, x_ref, o_ref):
    # wb_ref: (2,) f32 in SMEM -> [weight, bias]
    # x_ref / o_ref: (blk_r, lane_w) tiles in VMEM
    w = wb_ref[0]
    b = wb_ref[1]
    x = x_ref[...].astype(jnp.float32)  # in-kernel cast: free VPU filler
    o_ref[...] = jnp.maximum(x * w + b, 0.0).astype(o_ref.dtype)


def _tile_budget():
    """Per-buffer block byte budget + scoped VMEM limit, per chip generation."""
    target_block_bytes = 4 << 20   # 4 MiB/buffer: v5e/v6e sweet spot
    vmem_limit = 32 << 20          # covers 2x input + 2x output double buffers
    try:
        # v7x: only 64 MiB physical VMEM per TC but ~3.2 TB/s HBM, so bigger
        # blocks amortize the ~0.35us per-grid-step overhead. Stay well under
        # physical VMEM (4 buffers x 8 MiB = 32 MiB, limit 40 MiB).
        if pltpu.get_tpu_info().vmem_capacity_bytes <= (64 << 20):
            target_block_bytes = 8 << 20
            vmem_limit = 40 << 20
    except Exception:
        pass
    return target_block_bytes, vmem_limit


def _pick_block_rows(rows, lane_w, itemsize, target_block_bytes):
    """Rows per block: multiple of 8 (sublane rule) unless one block covers all."""
    if rows <= 16:
        return rows  # single block; block dim == full array dim is allowed
    blk = max(8, target_block_bytes // (lane_w * itemsize))
    # At least 2 grid steps so both v7x TensorCores stream data.
    blk = min(blk, -(-rows // 2))
    return max(8, ((blk + 7) // 8) * 8)


def conv1x1_relu(x_nchw, weight, bias):
    """Pallas forward of M: y = relu(conv1x1(x)) == relu(x * w + b), C == 1."""
    N, C, H, W = x_nchw.shape
    assert C == 1, "module has Conv2d(1, 1, kernel_size=1)"
    orig_shape = x_nchw.shape
    out_dtype = x_nchw.dtype
    total = N * C * H * W
    itemsize = jnp.dtype(x_nchw.dtype).itemsize

    # Lane-dense 2-D slab. Prefer zero-copy contiguous reshapes; pad only a
    # (< LANE_W) remainder when unavoidable.
    needs_strip = False
    if W % 128 == 0 and W >= 256:
        lane_w = W
        rows = N * C * H
        x2d = x_nchw.reshape(rows, lane_w)
    elif total % LANE_W == 0:
        lane_w = LANE_W
        rows = total // LANE_W
        x2d = x_nchw.reshape(rows, lane_w)
    else:
        lane_w = LANE_W
        rows = pl.cdiv(total, LANE_W)
        flat = jnp.pad(x_nchw.reshape(-1), (0, rows * LANE_W - total))
        x2d = flat.reshape(rows, lane_w)
        needs_strip = True  # padded tail computes relu(b) which may be nonzero

    target_block_bytes, vmem_limit = _tile_budget()
    blk_r = _pick_block_rows(rows, lane_w, itemsize, target_block_bytes)
    grid = (pl.cdiv(rows, blk_r),)  # partial last block masked by Pallas

    wb = jnp.stack([jnp.asarray(weight, jnp.float32).reshape(()),
                    jnp.asarray(bias, jnp.float32).reshape(())])

    out2d = pl.pallas_call(
        _scale_bias_relu_kernel,
        out_shape=jax.ShapeDtypeStruct((rows, lane_w), out_dtype),
        grid=grid,
        in_specs=[
            pl.BlockSpec(memory_space=pltpu.SMEM),            # [w, b] scalars
            pl.BlockSpec((blk_r, lane_w), lambda i: (i, 0)),  # input tile
        ],
        out_specs=pl.BlockSpec((blk_r, lane_w), lambda i: (i, 0)),
        compiler_params=pltpu.CompilerParams(
            dimension_semantics=("parallel",),
            vmem_limit_bytes=vmem_limit,
        ),
    )(wb, x2d)

    if needs_strip:
        return out2d.reshape(-1)[:total].reshape(orig_shape)
    return out2d.reshape(orig_shape)


# TODO(synk): QuantStub/DeQuantStub are identity in eager (non-converted) mode;
# fake-quantization (scale/zero-point round-trip) is not simulated here.


if __name__ == "__main__":
    key = jax.random.PRNGKey(0)
    kx, kw, kb, kx2, kx3 = jax.random.split(key, 5)

    # Deterministic parameters for Conv2d(1,1,1): scalar weight + scalar bias.
    weight = jax.random.normal(kw, (), dtype=jnp.float32) * 0.5
    bias = jax.random.normal(kb, (), dtype=jnp.float32) * 0.1

    # 1) Small shape consistent with Conv2d(1, 1, 1): exercises the padded
    #    remainder path (total=512 < 1024) with a single block.
    x = jax.random.normal(kx, (2, 1, 16, 16), dtype=jnp.float32)
    y = conv1x1_relu(x, weight, bias)
    jax.block_until_ready(y)
    y_ref = jnp.maximum(x * weight + bias, 0.0)
    assert y.shape == x.shape and y.dtype == x.dtype
    assert jnp.allclose(y, y_ref, atol=1e-6), "mismatch (padded path)"

    # 2) W is a lane-dense multiple of 128: zero-copy reshape to (N*H, W),
    #    multi-step grid, no pad, no strip slice.
    x_big = jax.random.normal(kx2, (4, 1, 384, 512), dtype=jnp.float32)
    y_big = conv1x1_relu(x_big, weight, bias)
    jax.block_until_ready(y_big)
    y_big_ref = jnp.maximum(x_big * weight + bias, 0.0)
    assert y_big.shape == x_big.shape
    assert jnp.allclose(y_big, y_big_ref, atol=1e-6), "mismatch (W-aligned path)"

    # 3) total % 1024 == 0 but W not lane-dense: zero-copy (total/1024, 1024)
    #    reshape with a partial last block in the grid (cdiv path).
    x_mid = jax.random.normal(kx3, (2, 1, 300, 128), dtype=jnp.float32)
    y_mid = conv1x1_relu(x_mid, weight, bias)
    jax.block_until_ready(y_mid)
    y_mid_ref = jnp.maximum(x_mid * weight + bias, 0.0)
    assert y_mid.shape == x_mid.shape
    assert jnp.allclose(y_mid, y_mid_ref, atol=1e-6), "mismatch (partial-block path)"

    print("KERNEL_OK")
</pallas_src>

<mosaic_0001>
module attributes {stable_mosaic.version = 11 : i64} {
  func.func @_scale_bias_relu_kernel(%arg0: i32, %arg1: memref<2xf32, #tpu.memory_space<smem>>, %arg2: memref<1x1024xf32, #tpu.memory_space<vmem>>, %arg3: memref<1x1024xf32, #tpu.memory_space<vmem>>) attributes {dimension_semantics = [#tpu.dimension_semantics<parallel>], iteration_bounds = array<i64: 1>, scalar_prefetch = 0 : i64, scratch_operands = 0 : i64, tpu.core_type = #tpu.core_type<tc>, window_params = [{transform_indices = @transform_0, window_bounds = array<i64: 2>}, {transform_indices = @transform_1, window_bounds = array<i64: 1, 1024>}, {transform_indices = @transform_2, window_bounds = array<i64: 1, 1024>}]} {
    %c0 = arith.constant 0 : index
    %0 = memref.load %arg1[%c0] : memref<2xf32, #tpu.memory_space<smem>>
    %c1 = arith.constant 1 : index
    %1 = memref.load %arg1[%c1] : memref<2xf32, #tpu.memory_space<smem>>
    %c0_0 = arith.constant 0 : index
    %c0_1 = arith.constant 0 : index
    %2 = vector.load %arg2[%c0_0, %c0_1] : memref<1x1024xf32, #tpu.memory_space<vmem>>, vector<1x1024xf32>
    %3 = vector.broadcast %0 : f32 to vector<1x1024xf32>
    %4 = arith.mulf %2, %3 : vector<1x1024xf32>
    %5 = vector.broadcast %1 : f32 to vector<1x1024xf32>
    %6 = arith.addf %4, %5 : vector<1x1024xf32>
    %cst = arith.constant 0.000000e+00 : f32
    %7 = vector.broadcast %cst : f32 to vector<1x1024xf32>
    %8 = arith.maximumf %6, %7 : vector<1x1024xf32>
    %c0_2 = arith.constant 0 : index
    %c0_3 = arith.constant 0 : index
    %9 = vector.load %arg3[%c0_2, %c0_3] : memref<1x1024xf32, #tpu.memory_space<vmem>>, vector<1x1024xf32>
    tpu.vector_store %arg3[%c0_2, %c0_3], %8 {strides = array<i32>} : memref<1x1024xf32, #tpu.memory_space<vmem>>, vector<1x1024xf32>,
    return
  }
  func.func @transform_0(%arg0: i32) -> i32 {
    %c0_i32 = arith.constant 0 : i32
    %c0_i32_0 = arith.constant 0 : i32
    return %c0_i32 : i32
  }
  func.func @transform_1(%arg0: i32) -> (i32, i32) {
    %c0_i32 = arith.constant 0 : i32
    %c0_i32_0 = arith.constant 0 : i32
    return %arg0, %c0_i32 : i32, i32
  }
  func.func @transform_2(%arg0: i32) -> (i32, i32) {
    %c0_i32 = arith.constant 0 : i32
    %c0_i32_0 = arith.constant 0 : i32
    return %arg0, %c0_i32 : i32, i32
  }
}

</mosaic_0001>

<llo_original>
// kernel: tpu_custom_call.1
$region0: #{tpu_custom_call.1}
  #allocation0 [shape = 'u32[]', space=smem, size = 0x4, offset = 0x4, fixed_abs, tag = 'smem constant byte address 0x4 - core index']
  #allocation1 [shape = 'u32[144,128]{1,0:T(1,128)}', space=vmem, size = 0x12000, scoped, tag = 'internal scratch']
  %s0 = inlined_call_operand.hbm [shape: f32[2], index: 0, kind: input, shape index: {}]
  %s1 = inlined_call_operand.hbm [shape: f32[1,1024], index: 1, kind: input, shape index: {}]
  %s2 = inlined_call_operand.hbm [shape: f32[1,1024], index: 2, kind: output, shape index: {}]
  %s3 = sld [smem:[#allocation0]]
  $region26: #{tpu_custom_call.1} parent=0
    _
  %s5 = ssub.s32 1, %s3
  %s6 = scalar_select 0, %s5, %s3
  $region1: #{tpu_custom_call.1} parent=0
    #allocation2 [shape = 'u8[512]{0}', space=smem, size = 0x200, scoped, tag = 'input window, operand 0, single buffered']
    #allocation3 [shape = 's32[1]{0}', space=sflag, size = 0x4, scoped, tag = 'scoped memory for tpu_custom_call.1']
    #allocation4 [shape = 's32[1]{0}', space=sflag, size = 0x4, scoped, tag = 'scoped memory for tpu_custom_call.1']
    #allocation5 [shape = 's32[1]{0}', space=sflag, size = 0x4, scoped, tag = 'scoped memory for tpu_custom_call.1']
    #allocation6 [shape = 'u8[4096]{0}', space=vmem, size = 0x1000, scoped, tag = 'input window, operand 1, single buffered']
    #allocation7 [shape = 'u8[4096]{0}', space=vmem, size = 0x1000, scoped, tag = 'output window, operand 0, single buffered']
    %7 = vsyncpa [#allocation5], 0
    %8 = vsyncpa [#allocation3], 0
    %9 = vsyncpa [#allocation4], 0
    // Predicated region
    $region2: #{tpu_custom_call.1} parent=1 // pred_check
      _
    $region3: #{tpu_custom_call.1} parent=1 // pred_check_branch
      %11 = sbr.rel (0) target = $region5
    $region4: #{tpu_custom_call.1} parent=1 // pred_region
      %s13 = ssub.s32 16, 16
      %14 = vsyncadd [#allocation5], %s13
      %17 = dma.hbm_to_smem %s0, 16, [#allocation2], [#allocation5]
    $region5: #{tpu_custom_call.1} parent=1 // pred_fallthru
      _
    // Predicated region
    $region6: #{tpu_custom_call.1} parent=1 // pred_check
      _
    $region7: #{tpu_custom_call.1} parent=1 // pred_check_branch
      %19 = sbr.rel (0) target = $region9
    $region8: #{tpu_custom_call.1} parent=1 // pred_region
      %s21 = ssub.s32 128, 128
      %22 = vsyncadd [#allocation3], %s21
      %s24 = sshll.u32 [#allocation6], 4
      %s25 = int_to_ptr.vmem [resolvable:$true] %s24
      %27 = dma.hbm_to_vmem [thread:$0]  %s1, 128, %s25, [#allocation3]
    $region9: #{tpu_custom_call.1} parent=1 // pred_fallthru
      _
    // Predicated region
    $region10: #{tpu_custom_call.1} parent=1 // pred_check
      _
    $region11: #{tpu_custom_call.1} parent=1 // pred_check_branch
      %29 = sbr.rel (0) target = $region13
    $region12: #{tpu_custom_call.1} parent=1 // pred_region
      %30 = dma.done [#allocation5], 16
    $region13: #{tpu_custom_call.1} parent=1 // pred_fallthru
      _
    // Predicated region
    $region14: #{tpu_custom_call.1} parent=1 // pred_check
      _
    $region15: #{tpu_custom_call.1} parent=1 // pred_check_branch
      %32 = sbr.rel (0) target = $region17
    $region16: #{tpu_custom_call.1} parent=1 // pred_region
      %33 = dma.done [#allocation3], 128
    $region17: #{tpu_custom_call.1} parent=1 // pred_fallthru
      _
    %34 = sfence
    %s35 = sld [smem:[#allocation2]]
    %s36 = sld [smem:[#allocation2 + $0x1]]
    %v37 = vld [vmem:[#allocation6] sm:$0xff]
    %v38 = vstv %s35
    %v39 = vmul.f32 %v37, %v38
    %v40 = vstv %s36
    %v41 = vadd.f32 %v39, %v40
    %v42 = vmax.f32 %v41, 0.0
    %43 = vst [vmem:[#allocation7] sm:$0xff] %v42
    // Predicated region
    $region18: #{tpu_custom_call.1} parent=1 // pred_check
      _
    $region19: #{tpu_custom_call.1} parent=1 // pred_check_branch
      %45 = sbr.rel (0) target = $region21
    $region20: #{tpu_custom_call.1} parent=1 // pred_region
      %s47 = ssub.s32 128, 128
      %48 = vsyncadd [#allocation4], %s47
      %s50 = sshll.u32 [#allocation7], 4
      %s51 = int_to_ptr.vmem [resolvable:$true] %s50
      %53 = dma.vmem_to_hbm [thread:$0]  %s51, 128, %s2, [#allocation4]
    $region21: #{tpu_custom_call.1} parent=1 // pred_fallthru
      _
    // Predicated region
    $region22: #{tpu_custom_call.1} parent=1 // pred_check
      _
    $region23: #{tpu_custom_call.1} parent=1 // pred_check_branch
      %55 = sbr.rel (0) target = $region25
    $region24: #{tpu_custom_call.1} parent=1 // pred_region
      %56 = dma.done [#allocation4], 128
    $region25: #{tpu_custom_call.1} parent=1 // pred_fallthru
      _
    %57 = vsyncpa [#allocation3], 1
    %58 = vsyncpa [#allocation4], 1
    %59 = vsyncpa [#allocation5], 1

</llo_original>
